<compile_context>
chip_gen: v5e
topology: v5e:2x2
jax: 0.10.0
libtpu: 0.0.40
codegen_flags: <defaults>
</compile_context>

<pallas_src>
import jax
import jax.numpy as jnp
from jax.experimental import pallas as pl
from jax.experimental.pallas import tpu as pltpu

LOG_SIG_MAX = 2.0
LOG_SIG_MIN = -20.0


def _round_up(x, m):
    return ((x + m - 1) // m) * m


def _cdiv(a, b):
    return -(-a // b)


# ----------------------------------------------------------------------------
# Kernel: one batch tile of the fused MLP.
#   x_ref   : (TB, S)            state tile (natural feature width, streamed)
#   w1_ref  : (S, H_pad)         layer-1 weight (resident)
#   w2_ref  : (H_pad, H_pad)     layer-2 weight (resident)
#   wh_ref  : (H_pad, HEAD_pad)  fused [actor_mean | critic] head (resident)
#   b_ref   : (2, H_pad)         rows 0/1 = b1, b2 (zero-padded)
#   bh_ref  : (1, HEAD_pad)      [bm | bc] (zero-padded)
#   out_ref : (HEAD_pad, TB)     rows [0:A) = mean, row A = value (transposed,
#                                batch on the lane axis -> lane-dense stores)
# ----------------------------------------------------------------------------
def actor_critic_kernel(x_ref, w1_ref, w2_ref, wh_ref, b_ref, bh_ref, out_ref):
    x = x_ref[...]                                                    # (TB, S)

    h = jnp.dot(x, w1_ref[...], preferred_element_type=jnp.float32)
    h = jnp.maximum(h + b_ref[0:1, :], 0.0)                           # (TB, H_pad)

    h = jnp.dot(h, w2_ref[...], preferred_element_type=jnp.float32)
    h = jnp.maximum(h + b_ref[1:2, :], 0.0)                           # (TB, H_pad)

    # Fused actor-mean + critic-value head (single MXU matmul), then a small
    # (TB, HEAD_pad) -> (HEAD_pad, TB) transpose so the store is lane-dense.
    head = jnp.dot(h, wh_ref[...], preferred_element_type=jnp.float32)
    head = head + bh_ref[...]                                         # (TB, HEAD_pad)
    out_ref[...] = head.T.astype(out_ref.dtype)                       # (HEAD_pad, TB)


# ----------------------------------------------------------------------------
# Parameter setup / packing (done once, outside the kernel).
# ----------------------------------------------------------------------------
def init_params(key, state_dim, action_dim, hidden_size):
    """Mimics nn.Linear default init; weights stored as (in, out)."""
    def linear(k, fan_in, fan_out):
        kw, kb = jax.random.split(k)
        lim = 1.0 / jnp.sqrt(jnp.float32(fan_in))
        w = jax.random.uniform(kw, (fan_in, fan_out), jnp.float32, -lim, lim)
        b = jax.random.uniform(kb, (fan_out,), jnp.float32, -lim, lim)
        return w, b

    k1, k2, k3, k4 = jax.random.split(key, 4)
    w1, b1 = linear(k1, state_dim, hidden_size)
    w2, b2 = linear(k2, hidden_size, hidden_size)
    wm, bm = linear(k3, hidden_size, action_dim)
    wc, bc = linear(k4, hidden_size, 1)
    log_std = jnp.zeros((1, action_dim), jnp.float32)  # nn.Parameter(torch.zeros(1, A))
    return dict(w1=w1, b1=b1, w2=w2, b2=b2, wm=wm, bm=bm, wc=wc, bc=bc,
                log_std=log_std)


def pack_params(p, state_dim, action_dim, hidden_size):
    """Per-matrix zero-padding: hidden padded to a multiple of 128 (lanes),
    fused head width padded to a multiple of 8 (sublanes). state_dim stays
    unpadded (full-dim BlockSpec)."""
    H_pad = _round_up(hidden_size, 128)
    HEAD = action_dim + 1
    HEAD_pad = _round_up(HEAD, 8)

    w1 = jnp.zeros((state_dim, H_pad), jnp.float32).at[:, :hidden_size].set(p["w1"])
    w2 = jnp.zeros((H_pad, H_pad), jnp.float32).at[:hidden_size, :hidden_size].set(p["w2"])

    wh = jnp.concatenate([p["wm"], p["wc"]], axis=1)                   # (H, A+1)
    w_head = jnp.zeros((H_pad, HEAD_pad), jnp.float32).at[:hidden_size, :HEAD].set(wh)

    b12 = jnp.zeros((2, H_pad), jnp.float32)
    b12 = b12.at[0, :hidden_size].set(p["b1"]).at[1, :hidden_size].set(p["b2"])

    b_head = jnp.zeros((1, HEAD_pad), jnp.float32).at[0, :HEAD].set(
        jnp.concatenate([p["bm"], p["bc"]]))

    return dict(w1=w1, w2=w2, w_head=w_head, b12=b12, b_head=b_head,
                log_std=p["log_std"], state_dim=state_dim,
                action_dim=action_dim, hidden_size=hidden_size,
                H_pad=H_pad, HEAD_pad=HEAD_pad)


# ----------------------------------------------------------------------------
# Forward wrapper.
# ----------------------------------------------------------------------------
def actor_critic_forward(state, packed):
    B, S = state.shape
    A = packed["action_dim"]
    H_pad = packed["H_pad"]
    HEAD_pad = packed["HEAD_pad"]

    # Batch tiling: one tile for modest batches; otherwise near-even tiles of
    # <= 2048 rows and >= 2 tiles so v7x's second TensorCore gets work.
    TB_MAX = 2048
    if B <= 1024:
        TB = _round_up(max(B, 1), 8)
        B_pad = TB
    else:
        n_tiles = max(2, _cdiv(B, TB_MAX))
        TB = _round_up(_cdiv(B, n_tiles), 128)
        B_pad = _round_up(B, TB)
    grid = (B_pad // TB,)

    x = state if B_pad == B else jnp.pad(state, ((0, B_pad - B), (0, 0)))

    flops = 2 * B_pad * (S * H_pad + H_pad * H_pad + H_pad * HEAD_pad)
    bytes_accessed = 4 * (B_pad * S + S * H_pad + H_pad * H_pad
                          + H_pad * HEAD_pad + 2 * H_pad + HEAD_pad
                          + HEAD_pad * B_pad)

    out = pl.pallas_call(
        actor_critic_kernel,
        out_shape=jax.ShapeDtypeStruct((HEAD_pad, B_pad), jnp.float32),
        grid=grid,
        in_specs=[
            pl.BlockSpec((TB, S), lambda i: (i, 0)),             # state tile (streamed)
            pl.BlockSpec((S, H_pad), lambda i: (0, 0)),          # w1 (resident)
            pl.BlockSpec((H_pad, H_pad), lambda i: (0, 0)),      # w2 (resident)
            pl.BlockSpec((H_pad, HEAD_pad), lambda i: (0, 0)),   # fused head (resident)
            pl.BlockSpec((2, H_pad), lambda i: (0, 0)),          # b1/b2 (resident)
            pl.BlockSpec((1, HEAD_pad), lambda i: (0, 0)),       # head bias (resident)
        ],
        out_specs=pl.BlockSpec((HEAD_pad, TB), lambda i: (0, i)),
        compiler_params=pltpu.CompilerParams(
            dimension_semantics=("parallel",),
            vmem_limit_bytes=32 * 1024 * 1024),
        cost_estimate=pl.CostEstimate(
            flops=flops, transcendentals=0, bytes_accessed=bytes_accessed),
    )(x, packed["w1"], packed["w2"], packed["w_head"],
      packed["b12"], packed["b_head"])

    mean = out[:A, :B].T                 # (B, A)
    value = out[A:A + 1, :B].T           # (B, 1)
    # std is batch-independent: computed once here, not in the kernel.
    std = jnp.broadcast_to(
        jnp.exp(jnp.clip(packed["log_std"], LOG_SIG_MIN, LOG_SIG_MAX)), (B, A))
    return mean, std, value


# ----------------------------------------------------------------------------
# Plain-JAX reference (matches the PyTorch module semantics).
# ----------------------------------------------------------------------------
def reference_forward(state, p):
    hi = jax.lax.Precision.HIGHEST
    h = jnp.maximum(jnp.dot(state, p["w1"], precision=hi) + p["b1"], 0.0)
    h = jnp.maximum(jnp.dot(h, p["w2"], precision=hi) + p["b2"], 0.0)
    mean = jnp.dot(h, p["wm"], precision=hi) + p["bm"]
    std = jnp.broadcast_to(
        jnp.exp(jnp.clip(p["log_std"], LOG_SIG_MIN, LOG_SIG_MAX)), mean.shape)
    value = jnp.dot(h, p["wc"], precision=hi) + p["bc"]
    return mean, std, value


if __name__ == "__main__":
    key = jax.random.PRNGKey(0)
    k_state, k_params = jax.random.split(key)

    batch, state_dim, action_dim, hidden = 8, 16, 4, 64
    state = jax.random.normal(k_state, (batch, state_dim), jnp.float32)
    raw = init_params(k_params, state_dim, action_dim, hidden)
    packed = pack_params(raw, state_dim, action_dim, hidden)

    mean, std, value = jax.block_until_ready(actor_critic_forward(state, packed))

    r_mean, r_std, r_value = reference_forward(state, raw)
    assert mean.shape == (batch, action_dim)
    assert std.shape == (batch, action_dim)
    assert value.shape == (batch, 1)
    assert jnp.allclose(mean, r_mean, atol=1e-4, rtol=1e-4)
    assert jnp.allclose(std, r_std, atol=1e-4, rtol=1e-4)
    assert jnp.allclose(value, r_value, atol=1e-4, rtol=1e-4)

    print("KERNEL_OK")
</pallas_src>

<mosaic_0001>
module attributes {stable_mosaic.version = 11 : i64} {
  func.func @actor_critic_kernel(%arg0: i32, %arg1: memref<8x16xf32, #tpu.memory_space<vmem>>, %arg2: memref<16x128xf32, #tpu.memory_space<vmem>>, %arg3: memref<128x128xf32, #tpu.memory_space<vmem>>, %arg4: memref<128x8xf32, #tpu.memory_space<vmem>>, %arg5: memref<2x128xf32, #tpu.memory_space<vmem>>, %arg6: memref<1x8xf32, #tpu.memory_space<vmem>>, %arg7: memref<8x8xf32, #tpu.memory_space<vmem>>) attributes {dimension_semantics = [#tpu.dimension_semantics<parallel>], iteration_bounds = array<i64: 1>, scalar_prefetch = 0 : i64, scratch_operands = 0 : i64, tpu.core_type = #tpu.core_type<tc>, window_params = [{transform_indices = @transform_0, window_bounds = array<i64: 8, 16>}, {pipeline_mode = #tpu.pipeline_mode<synchronous>, transform_indices = @transform_1, window_bounds = array<i64: 16, 128>}, {pipeline_mode = #tpu.pipeline_mode<synchronous>, transform_indices = @transform_2, window_bounds = array<i64: 128, 128>}, {pipeline_mode = #tpu.pipeline_mode<synchronous>, transform_indices = @transform_3, window_bounds = array<i64: 128, 8>}, {pipeline_mode = #tpu.pipeline_mode<synchronous>, transform_indices = @transform_4, window_bounds = array<i64: 2, 128>}, {pipeline_mode = #tpu.pipeline_mode<synchronous>, transform_indices = @transform_5, window_bounds = array<i64: 1, 8>}, {transform_indices = @transform_6, window_bounds = array<i64: 8, 8>}]} {
    %c0 = arith.constant 0 : index
    %c0_0 = arith.constant 0 : index
    %0 = vector.load %arg1[%c0, %c0_0] : memref<8x16xf32, #tpu.memory_space<vmem>>, vector<8x16xf32>
    %c0_1 = arith.constant 0 : index
    %c0_2 = arith.constant 0 : index
    %1 = vector.load %arg2[%c0_1, %c0_2] : memref<16x128xf32, #tpu.memory_space<vmem>>, vector<16x128xf32>
    %cst = arith.constant dense<0.000000e+00> : vector<8x128xf32>
    %2 = tpu.matmul %0, %1, %cst {dimension_numbers = #tpu.dot_dimension_numbers<[1], [0], [0], [1], [0, 0, 1, 1], [], []>} : vector<8x16xf32>, vector<16x128xf32>, vector<8x128xf32> -> vector<8x128xf32>
    %c0_3 = arith.constant 0 : index
    %c0_4 = arith.constant 0 : index
    %3 = vector.load %arg5[%c0_3, %c0_4] : memref<2x128xf32, #tpu.memory_space<vmem>>, vector<1x128xf32>
    %4 = vector.broadcast %3 : vector<1x128xf32> to vector<8x128xf32>
    %5 = arith.addf %2, %4 : vector<8x128xf32>
    %cst_5 = arith.constant 0.000000e+00 : f32
    %6 = vector.broadcast %cst_5 : f32 to vector<8x128xf32>
    %7 = arith.maximumf %5, %6 : vector<8x128xf32>
    %c0_6 = arith.constant 0 : index
    %c0_7 = arith.constant 0 : index
    %8 = vector.load %arg3[%c0_6, %c0_7] : memref<128x128xf32, #tpu.memory_space<vmem>>, vector<128x128xf32>
    %cst_8 = arith.constant dense<0.000000e+00> : vector<8x128xf32>
    %9 = tpu.matmul %7, %8, %cst_8 {dimension_numbers = #tpu.dot_dimension_numbers<[1], [0], [0], [1], [0, 0, 1, 1], [], []>} : vector<8x128xf32>, vector<128x128xf32>, vector<8x128xf32> -> vector<8x128xf32>
    %c1 = arith.constant 1 : index
    %c0_9 = arith.constant 0 : index
    %10 = vector.load %arg5[%c1, %c0_9] : memref<2x128xf32, #tpu.memory_space<vmem>>, vector<1x128xf32>
    %11 = vector.broadcast %10 : vector<1x128xf32> to vector<8x128xf32>
    %12 = arith.addf %9, %11 : vector<8x128xf32>
    %cst_10 = arith.constant 0.000000e+00 : f32
    %13 = vector.broadcast %cst_10 : f32 to vector<8x128xf32>
    %14 = arith.maximumf %12, %13 : vector<8x128xf32>
    %c0_11 = arith.constant 0 : index
    %c0_12 = arith.constant 0 : index
    %15 = vector.load %arg4[%c0_11, %c0_12] : memref<128x8xf32, #tpu.memory_space<vmem>>, vector<128x8xf32>
    %cst_13 = arith.constant dense<0.000000e+00> : vector<8x8xf32>
    %16 = tpu.matmul %14, %15, %cst_13 {dimension_numbers = #tpu.dot_dimension_numbers<[1], [0], [0], [1], [0, 0, 1, 1], [], []>} : vector<8x128xf32>, vector<128x8xf32>, vector<8x8xf32> -> vector<8x8xf32>
    %c0_14 = arith.constant 0 : index
    %c0_15 = arith.constant 0 : index
    %17 = vector.load %arg6[%c0_14, %c0_15] : memref<1x8xf32, #tpu.memory_space<vmem>>, vector<1x8xf32>
    %18 = vector.broadcast %17 : vector<1x8xf32> to vector<8x8xf32>
    %19 = arith.addf %16, %18 : vector<8x8xf32>
    %20 = tpu.transpose %19, [1, 0] : vector<8x8xf32> -> vector<8x8xf32>
    %c0_16 = arith.constant 0 : index
    %c0_17 = arith.constant 0 : index
    %21 = vector.load %arg7[%c0_16, %c0_17] : memref<8x8xf32, #tpu.memory_space<vmem>>, vector<8x8xf32>
    tpu.vector_store %arg7[%c0_16, %c0_17], %20 {strides = array<i32>} : memref<8x8xf32, #tpu.memory_space<vmem>>, vector<8x8xf32>,
    return
  }
  func.func @transform_0(%arg0: i32) -> (i32, i32) {
    %c0_i32 = arith.constant 0 : i32
    %c0_i32_0 = arith.constant 0 : i32
    return %arg0, %c0_i32 : i32, i32
  }
  func.func @transform_1(%arg0: i32) -> (i32, i32) {
    %c0_i32 = arith.constant 0 : i32
    %c0_i32_0 = arith.constant 0 : i32
    %c0_i32_1 = arith.constant 0 : i32
    return %c0_i32, %c0_i32_0 : i32, i32
  }
  func.func @transform_2(%arg0: i32) -> (i32, i32) {
    %c0_i32 = arith.constant 0 : i32
    %c0_i32_0 = arith.constant 0 : i32
    %c0_i32_1 = arith.constant 0 : i32
    return %c0_i32, %c0_i32_0 : i32, i32
  }
  func.func @transform_3(%arg0: i32) -> (i32, i32) {
    %c0_i32 = arith.constant 0 : i32
    %c0_i32_0 = arith.constant 0 : i32
    %c0_i32_1 = arith.constant 0 : i32
    return %c0_i32, %c0_i32_0 : i32, i32
  }
  func.func @transform_4(%arg0: i32) -> (i32, i32) {
    %c0_i32 = arith.constant 0 : i32
    %c0_i32_0 = arith.constant 0 : i32
    %c0_i32_1 = arith.constant 0 : i32
    return %c0_i32, %c0_i32_0 : i32, i32
  }
  func.func @transform_5(%arg0: i32) -> (i32, i32) {
    %c0_i32 = arith.constant 0 : i32
    %c0_i32_0 = arith.constant 0 : i32
    %c0_i32_1 = arith.constant 0 : i32
    return %c0_i32, %c0_i32_0 : i32, i32
  }
  func.func @transform_6(%arg0: i32) -> (i32, i32) {
    %c0_i32 = arith.constant 0 : i32
    %c0_i32_0 = arith.constant 0 : i32
    return %c0_i32, %arg0 : i32, i32
  }
}

</mosaic_0001>

<llo_original>
// kernel: tpu_custom_call.1
$region0: #{tpu_custom_call.1}
  #allocation0 [shape = 'u32[]', space=smem, size = 0x4, offset = 0x4, fixed_abs, tag = 'smem constant byte address 0x4 - core index']
  #allocation1 [shape = 'u32[72,128]{1,0:T(1,128)}', space=vmem, size = 0x9000, scoped, tag = 'internal scratch']
  %s0 = inlined_call_operand.vmem [shape: f32[8,16], index: 0, kind: input, shape index: {}]
  %s1 = inlined_call_operand.hbm [shape: f32[16,128], index: 1, kind: input, shape index: {}]
  %s2 = inlined_call_operand.vmem [shape: f32[128,128], index: 2, kind: input, shape index: {}]
  %s3 = inlined_call_operand.vmem [shape: f32[128,8], index: 3, kind: input, shape index: {}]
  %s4 = inlined_call_operand.vmem [shape: f32[2,128], index: 4, kind: input, shape index: {}]
  %s5 = inlined_call_operand.vmem [shape: f32[1,8], index: 5, kind: input, shape index: {}]
  %s6 = inlined_call_operand.hbm [shape: f32[8,8], index: 6, kind: output, shape index: {}]
  %s7 = sld [smem:[#allocation0]]
  $region38: #{tpu_custom_call.1} parent=0
    _
  %s9 = ssub.s32 1, %s7
  %s10 = scalar_select 0, %s9, %s7
  $region1: #{tpu_custom_call.1} parent=0
    #allocation2 [shape = 'u8[8192]{0}', space=vmem, size = 0x2000, scoped, tag = 'input window, operand 1, single buffered']
    #allocation3 [shape = 's32[1]{0}', space=sflag, size = 0x4, scoped, tag = 'scoped memory for tpu_custom_call.1']
    #allocation4 [shape = 's32[1]{0}', space=sflag, size = 0x4, scoped, tag = 'scoped memory for tpu_custom_call.1']
    #allocation5 [shape = 'u8[4096]{0}', space=vmem, size = 0x1000, scoped, tag = 'output window, operand 0, single buffered']
    %11 = vsyncpa [#allocation3], 0
    %12 = vsyncpa [#allocation4], 0
    // Predicated region
    $region2: #{tpu_custom_call.1} parent=1 // pred_check
      _
    $region3: #{tpu_custom_call.1} parent=1 // pred_check_branch
      %14 = sbr.rel (0) target = $region5
    $region4: #{tpu_custom_call.1} parent=1 // pred_region
      _
    $region5: #{tpu_custom_call.1} parent=1 // pred_fallthru
      _
    // Predicated region
    $region6: #{tpu_custom_call.1} parent=1 // pred_check
      _
    $region7: #{tpu_custom_call.1} parent=1 // pred_check_branch
      %16 = sbr.rel (0) target = $region9
    $region8: #{tpu_custom_call.1} parent=1 // pred_region
      %18 = vsyncadd [#allocation3], 0
      %s19 = sshll.u32 %s1, 4
      %s20 = int_to_ptr.hbm [resolvable:$true] %s19
      %s21 = sshll.u32 [#allocation2], 4
      %s22 = int_to_ptr.vmem [resolvable:$true] %s21
      %27 = dma.hbm_to_vmem [thread:$0]  %s20, 256, %s22, [#allocation3], 128, 128, 8
    $region9: #{tpu_custom_call.1} parent=1 // pred_fallthru
      _
    // Predicated region
    $region10: #{tpu_custom_call.1} parent=1 // pred_check
      _
    $region11: #{tpu_custom_call.1} parent=1 // pred_check_branch
      %29 = sbr.rel (0) target = $region13
    $region12: #{tpu_custom_call.1} parent=1 // pred_region
      _
    $region13: #{tpu_custom_call.1} parent=1 // pred_fallthru
      _
    // Predicated region
    $region14: #{tpu_custom_call.1} parent=1 // pred_check
      _
    $region15: #{tpu_custom_call.1} parent=1 // pred_check_branch
      %31 = sbr.rel (0) target = $region17
    $region16: #{tpu_custom_call.1} parent=1 // pred_region
      _
    $region17: #{tpu_custom_call.1} parent=1 // pred_fallthru
      _
    // Predicated region
    $region18: #{tpu_custom_call.1} parent=1 // pred_check
      _
    $region19: #{tpu_custom_call.1} parent=1 // pred_check_branch
      %33 = sbr.rel (0) target = $region21
    $region20: #{tpu_custom_call.1} parent=1 // pred_region
      _
    $region21: #{tpu_custom_call.1} parent=1 // pred_fallthru
      _
    // Predicated region
    $region22: #{tpu_custom_call.1} parent=1 // pred_check
      _
    $region23: #{tpu_custom_call.1} parent=1 // pred_check_branch
      %35 = sbr.rel (0) target = $region25
    $region24: #{tpu_custom_call.1} parent=1 // pred_region
      _
    $region25: #{tpu_custom_call.1} parent=1 // pred_fallthru
      _
    // Predicated region
    $region26: #{tpu_custom_call.1} parent=1 // pred_check
      _
    $region27: #{tpu_custom_call.1} parent=1 // pred_check_branch
      %37 = sbr.rel (0) target = $region29
    $region28: #{tpu_custom_call.1} parent=1 // pred_region
      %39 = dma.done [#allocation3], 256
    $region29: #{tpu_custom_call.1} parent=1 // pred_fallthru
      _
    %v40 = vld [vmem:[%s0] sm:$0xff]
    %v41 = vld [vmem:[#allocation2] sm:$0xff]
    %v42 = vld [vmem:[#allocation2 + $0x8] sm:$0xff]
    %v43 = vld [vmem:[%s4] sm:$0x1]
    %v44 = vperm.slane %v43, 0
    %vm45 = vcmask 130048
    %v47 = vsel %vm45, %v40, 0
    %49 = vmatpush.msra.mxu0 0.0
    %50 = vmatpush.msra.mxu0 0.0
    %51 = vmatpush.msra.mxu0 0.0
    %52 = vmatpush.msra.mxu0 0.0
    %53 = vmatpush.msra.mxu0 0.0
    %54 = vmatpush.msra.mxu0 0.0
    %55 = vmatpush.msra.mxu0 0.0
    %56 = vmatpush.msra.mxu0 0.0
    %57 = vmatpush.msra.mxu0 0.0
    %58 = vmatpush.msra.mxu0 0.0
    %59 = vmatpush.msra.mxu0 0.0
    %60 = vmatpush.msra.mxu0 0.0
    %61 = vmatpush.msra.mxu0 0.0
    %62 = vmatpush.msra.mxu0 0.0
    %63 = vmatpush.msra.mxu0 %v42
    %64 = vmatpush.msra.mxu0 %v41
    %65 = vmatmul.f32.gmra.mxu0 %v47
    %v66 = vpop.f32.mrf.mxu0
    %v67 = vadd.f32 %v44, %v66
    %68 = vdwg.mxu0
    %v69 = vmax.f32 %v67, 0.0
    %v70 = vld [vmem:[%s2] sm:$0xff]
    %v71 = vld [vmem:[%s2 + $0x8] sm:$0xff]
    %v72 = vld [vmem:[%s2 + $0x10] sm:$0xff]
    %v73 = vld [vmem:[%s2 + $0x18] sm:$0xff]
    %v74 = vld [vmem:[%s2 + $0x20] sm:$0xff]
    %v75 = vld [vmem:[%s2 + $0x28] sm:$0xff]
    %v76 = vld [vmem:[%s2 + $0x30] sm:$0xff]
    %v77 = vld [vmem:[%s2 + $0x38] sm:$0xff]
    %v78 = vld [vmem:[%s2 + $0x40] sm:$0xff]
    %v79 = vld [vmem:[%s2 + $0x48] sm:$0xff]
    %v80 = vld [vmem:[%s2 + $0x50] sm:$0xff]
    %v81 = vld [vmem:[%s2 + $0x58] sm:$0xff]
    %v82 = vld [vmem:[%s2 + $0x60] sm:$0xff]
    %v83 = vld [vmem:[%s2 + $0x68] sm:$0xff]
    %v84 = vld [vmem:[%s2 + $0x70] sm:$0xff]
    %v85 = vld [vmem:[%s2 + $0x78] sm:$0xff]
    %v86 = vld [vmem:[%s4 + $0x1] sm:$0x1]
    %v87 = vperm.slane %v86, 0
    %88 = vmatpush.msra.mxu0 %v85
    %89 = vmatpush.msra.mxu0 %v84
    %90 = vmatpush.msra.mxu0 %v83
    %91 = vmatpush.msra.mxu0 %v82
    %92 = vmatpush.msra.mxu0 %v81
    %93 = vmatpush.msra.mxu0 %v80
    %94 = vmatpush.msra.mxu0 %v79
    %95 = vmatpush.msra.mxu0 %v78
    %96 = vmatpush.msra.mxu0 %v77
    %97 = vmatpush.msra.mxu0 %v76
    %98 = vmatpush.msra.mxu0 %v75
    %99 = vmatpush.msra.mxu0 %v74
    %100 = vmatpush.msra.mxu0 %v73
    %101 = vmatpush.msra.mxu0 %v72
    %102 = vmatpush.msra.mxu0 %v71
    %103 = vmatpush.msra.mxu0 %v70
    %104 = vmatmul.f32.gmra.mxu0 %v69
    %v105 = vpop.f32.mrf.mxu0
    %v106 = vadd.f32 %v87, %v105
    %107 = vdwg.mxu0
    %v108 = vmax.f32 %v106, 0.0
    %v109 = vld [vmem:[%s3] sm:$0xff]
    %v110 = vld [vmem:[%s3 + $0x8] sm:$0xff]
    %v111 = vld [vmem:[%s3 + $0x10] sm:$0xff]
    %v112 = vld [vmem:[%s3 + $0x18] sm:$0xff]
    %v113 = vld [vmem:[%s3 + $0x20] sm:$0xff]
    %v114 = vld [vmem:[%s3 + $0x28] sm:$0xff]
    %v115 = vld [vmem:[%s3 + $0x30] sm:$0xff]
    %v116 = vld [vmem:[%s3 + $0x38] sm:$0xff]
    %v117 = vld [vmem:[%s3 + $0x40] sm:$0xff]
    %v118 = vld [vmem:[%s3 + $0x48] sm:$0xff]
    %v119 = vld [vmem:[%s3 + $0x50] sm:$0xff]
    %v120 = vld [vmem:[%s3 + $0x58] sm:$0xff]
    %v121 = vld [vmem:[%s3 + $0x60] sm:$0xff]
    %v122 = vld [vmem:[%s3 + $0x68] sm:$0xff]
    %v123 = vld [vmem:[%s3 + $0x70] sm:$0xff]
    %v124 = vld [vmem:[%s3 + $0x78] sm:$0xff]
    %v125 = vld [vmem:[%s5] sm:$0x1]
    %v127 = vperm.slane %v125, 0
    %129 = vmatpush.msra.mxu0 %v124
    %130 = vmatpush.msra.mxu0 %v123
    %131 = vmatpush.msra.mxu0 %v122
    %132 = vmatpush.msra.mxu0 %v121
    %133 = vmatpush.msra.mxu0 %v120
    %134 = vmatpush.msra.mxu0 %v119
    %135 = vmatpush.msra.mxu0 %v118
    %136 = vmatpush.msra.mxu0 %v117
    %137 = vmatpush.msra.mxu0 %v116
    %138 = vmatpush.msra.mxu0 %v115
    %139 = vmatpush.msra.mxu0 %v114
    %140 = vmatpush.msra.mxu0 %v113
    %141 = vmatpush.msra.mxu0 %v112
    %142 = vmatpush.msra.mxu0 %v111
    %143 = vmatpush.msra.mxu0 %v110
    %144 = vmatpush.msra.mxu0 %v109
    %145 = vmatmul.f32.gmra.mxu0 %v108
    %v146 = vpop.f32.mrf.mxu0
    %v147 = vadd.f32 %v127, %v146
    %148 = vdwg.mxu0
    %149 = vxpose.xlu0.b32.start [1/16] %v147, 128
    %150 = vxpose.xlu0.b32.cont [2/16] 0.0, 128
    %151 = vxpose.xlu0.b32.cont [3/16] 0.0, 128
    %152 = vxpose.xlu0.b32.cont [4/16] 0.0, 128
    %153 = vxpose.xlu0.b32.cont [5/16] 0.0, 128
    %154 = vxpose.xlu0.b32.cont [6/16] 0.0, 128
    %155 = vxpose.xlu0.b32.cont [7/16] 0.0, 128
    %156 = vxpose.xlu0.b32.cont [8/16] 0.0, 128
    %157 = vxpose.xlu0.b32.cont [9/16] 0.0, 128
    %158 = vxpose.xlu0.b32.cont [10/16] 0.0, 128
    %159 = vxpose.xlu0.b32.cont [11/16] 0.0, 128
    %160 = vxpose.xlu0.b32.cont [12/16] 0.0, 128
    %161 = vxpose.xlu0.b32.cont [13/16] 0.0, 128
    %162 = vxpose.xlu0.b32.cont [14/16] 0.0, 128
    %163 = vxpose.xlu0.b32.cont [15/16] 0.0, 128
    %164 = vxpose.xlu0.b32.end [16/16] 0.0, 128
    %v165 = vpop.trf.xlu0
    %v166 = vpop.trf.xlu0
    %v167 = vpop.trf.xlu0
    %v168 = vpop.trf.xlu0
    %v169 = vpop.trf.xlu0
    %v170 = vpop.trf.xlu0
    %v171 = vpop.trf.xlu0
    %v172 = vpop.trf.xlu0
    %v173 = vpop.trf.xlu0
    %v174 = vpop.trf.xlu0
    %v175 = vpop.trf.xlu0
    %v176 = vpop.trf.xlu0
    %v177 = vpop.trf.xlu0
    %v178 = vpop.trf.xlu0
    %v179 = vpop.trf.xlu0
    %v180 = vpop.trf.xlu0
    %vm181 = vcmask 64512
    %182 = vst.msk [vmem:[#allocation5] sm:$0xff] %vm181, %v165
    // Predicated region
    $region30: #{tpu_custom_call.1} parent=1 // pred_check
      _
    $region31: #{tpu_custom_call.1} parent=1 // pred_check_branch
      %184 = sbr.rel (0) target = $region33
    $region32: #{tpu_custom_call.1} parent=1 // pred_region
      %186 = vsyncadd [#allocation4], 0
      %s188 = sshll.u32 [#allocation5], 4
      %s189 = int_to_ptr.vmem [resolvable:$true] %s188
      %s190 = sshll.u32 %s6, 4
      %s191 = int_to_ptr.hbm [resolvable:$true] %s190
      %193 = dma.vmem_to_hbm [thread:$0]  %s189, 128, %s191, [#allocation4]
    $region33: #{tpu_custom_call.1} parent=1 // pred_fallthru
      _
    // Predicated region
    $region34: #{tpu_custom_call.1} parent=1 // pred_check
      _
    $region35: #{tpu_custom_call.1} parent=1 // pred_check_branch
      %195 = sbr.rel (0) target = $region37
    $region36: #{tpu_custom_call.1} parent=1 // pred_region
      %197 = dma.done [#allocation4], 128
    $region37: #{tpu_custom_call.1} parent=1 // pred_fallthru
      _
    %198 = vsyncpa [#allocation3], 1
    %199 = vsyncpa [#allocation4], 1

</llo_original>
